<compile_context>
chip_gen: v7x
topology: tpu7x:2x2x1
jax: 0.10.0
libtpu: 0.0.40
codegen_flags: <defaults>
</compile_context>

<pallas_src>
import functools

import jax
import jax.numpy as jnp
from jax.experimental import pallas as pl
from jax.experimental.pallas import tpu as pltpu

FC1_DIMS = 1024
FC2_DIMS = 512


def _critic_kernel(x_ref, w1_ref, b1_ref, w2_ref, b2_ref, w3_ref, b3_ref,
                   out_ref, acc_ref):
    # Per grid step:
    #   x:  (TB, D)   f32     w1: (D, TK)   f32     b1: (1, TK)  f32
    #   w2: (TK, FC2) bf16    b2: (1, FC2)  f32     w3: (1, FC2) f32
    #   b3: (1,)      f32 (SMEM)
    #   out: (TB, 1)  f32     acc: (TB, FC2) f32 scratch
    k = pl.program_id(1)

    @pl.when(k == 0)
    def _():
        acc_ref[...] = jnp.zeros_like(acc_ref)

    # Layer 1 (f32, K = D is tiny): this k-slice of h1's FC1 columns.
    h1 = jnp.dot(x_ref[...], w1_ref[...], preferred_element_type=jnp.float32)
    h1 = jnp.maximum(h1 + b1_ref[...], 0.0)

    # Layer 2 partial product on the MXU: bf16 inputs, f32 accumulation.
    acc_ref[...] += jnp.dot(h1.astype(jnp.bfloat16), w2_ref[...],
                            preferred_element_type=jnp.float32)

    @pl.when(k == pl.num_programs(1) - 1)
    def _():
        h2 = jnp.maximum(acc_ref[...] + b2_ref[...], 0.0)
        prod = h2 * w3_ref[...]                                  # (TB, FC2) VPU
        # Pre-reduce the 128-lane groups with VPU adds; one XLU reduce at the end.
        partial = prod[:, 0:128]
        for c in range(1, FC2_DIMS // 128):
            partial = partial + prod[:, c * 128:(c + 1) * 128]
        v = jnp.sum(partial, axis=-1, keepdims=True) + b3_ref[0]
        out_ref[...] = v.astype(out_ref.dtype)


def _round_up(n, m):
    return ((n + m - 1) // m) * m


@functools.partial(jax.jit, static_argnames=("block_b", "block_k"))
def critic_forward(x, params, block_b=512, block_k=256):
    w1, b1, w2, b2, w3, b3 = params
    B, D = x.shape
    assert w1.shape == (D, FC1_DIMS) and FC1_DIMS % block_k == 0

    # Adaptive batch tile: multiple of 8 sublanes, <= block_b, sized so padded
    # rows are minimized for any B (e.g. B=300 -> TB=304, not 512).
    n_tiles = -(-B // block_b)
    TB = _round_up(-(-B // n_tiles), 8)
    Bp = n_tiles * TB
    if Bp != B:
        x = jnp.pad(x, ((0, Bp - B), (0, 0)))

    num_k = FC1_DIMS // block_k
    grid = (n_tiles, num_k)

    flops = 2 * Bp * (D * FC1_DIMS + FC1_DIMS * FC2_DIMS + FC2_DIMS)
    w_bytes = (D * FC1_DIMS * 4 + FC1_DIMS * 4           # w1, b1 (f32)
               + FC1_DIMS * FC2_DIMS * 2                 # w2 (bf16)
               + 2 * FC2_DIMS * 4 + 4)                   # b2, w3, b3 (f32)
    bytes_accessed = n_tiles * w_bytes + Bp * (D + 1) * 4

    out = pl.pallas_call(
        _critic_kernel,
        out_shape=jax.ShapeDtypeStruct((Bp, 1), jnp.float32),
        grid=grid,
        in_specs=[
            pl.BlockSpec((TB, D), lambda i, k: (i, 0)),              # x
            pl.BlockSpec((D, block_k), lambda i, k: (0, k)),         # w1 tile
            pl.BlockSpec((1, block_k), lambda i, k: (0, k)),         # b1 tile
            pl.BlockSpec((block_k, FC2_DIMS), lambda i, k: (k, 0)),  # w2 tile
            pl.BlockSpec((1, FC2_DIMS), lambda i, k: (0, 0)),        # b2 (resident)
            pl.BlockSpec((1, FC2_DIMS), lambda i, k: (0, 0)),        # w3 (resident)
            pl.BlockSpec(memory_space=pltpu.MemorySpace.SMEM),       # b3 scalar
        ],
        out_specs=pl.BlockSpec((TB, 1), lambda i, k: (i, 0)),
        scratch_shapes=[pltpu.VMEM((TB, FC2_DIMS), jnp.float32)],
        compiler_params=pltpu.CompilerParams(
            dimension_semantics=("parallel", "arbitrary"),
        ),
        cost_estimate=pl.CostEstimate(
            flops=flops, transcendentals=0, bytes_accessed=bytes_accessed),
    )(x, w1, b1, w2, b2, w3, b3)

    return out[:B]


def init_critic_params(key, state_dim):
    """Torch nn.Linear-style init: U(-1/sqrt(fan_in), 1/sqrt(fan_in)).
    Weights stored as (in, out). Only w2 is bf16; w1/w3 and all biases stay
    f32. w3 is stored transposed as (1, FC2_DIMS) for the VPU reduce; b3 is a
    flat (1,) scalar that lives in SMEM."""
    dims = [(state_dim, FC1_DIMS), (FC1_DIMS, FC2_DIMS), (FC2_DIMS, 1)]
    params = []
    for li, (fan_in, fan_out) in enumerate(dims):
        key, kw, kb = jax.random.split(key, 3)
        bound = 1.0 / (fan_in ** 0.5)
        w = jax.random.uniform(kw, (fan_in, fan_out), jnp.float32, -bound, bound)
        b = jax.random.uniform(kb, (1, fan_out), jnp.float32, -bound, bound)
        if li == 1:
            w = w.astype(jnp.bfloat16)
        if li == 2:
            w = w.T                      # (1, FC2_DIMS), f32
            b = b.reshape(1)             # (1,), SMEM scalar
        params += [w, b]
    return tuple(params)


def _reference(x, params):
    w1, b1, w2, b2, w3, b3 = params
    h1 = jnp.maximum(
        jnp.dot(x, w1, preferred_element_type=jnp.float32) + b1, 0.0)
    h2 = jnp.maximum(
        jnp.dot(h1.astype(jnp.bfloat16), w2, preferred_element_type=jnp.float32)
        + b2, 0.0)
    return jnp.sum(h2 * w3, axis=-1, keepdims=True) + b3


if __name__ == "__main__":
    key = jax.random.PRNGKey(0)
    k_x, k_x2, k_p = jax.random.split(key, 3)

    STATE_DIM = 8  # state_shape = (8,)
    params = init_critic_params(k_p, STATE_DIM)

    # Small RL-style batch: single batch tile, k-pipelined weight fetch.
    x = jax.random.normal(k_x, (8, STATE_DIM), dtype=jnp.float32)
    value = critic_forward(x, params)
    jax.block_until_ready(value)
    ref = _reference(x, params)
    assert value.shape == (8, 1)
    assert jnp.allclose(value, ref, atol=1e-2, rtol=1e-2), \
        float(jnp.max(jnp.abs(value - ref)))

    # Multi-tile + padded-batch path (adaptive TB; padded rows dropped).
    x2 = jax.random.normal(k_x2, (20, STATE_DIM), dtype=jnp.float32)
    value2 = critic_forward(x2, params, block_b=16)
    jax.block_until_ready(value2)
    ref2 = _reference(x2, params)
    assert value2.shape == (20, 1)
    assert jnp.allclose(value2, ref2, atol=1e-2, rtol=1e-2), \
        float(jnp.max(jnp.abs(value2 - ref2)))

    print("KERNEL_OK")
</pallas_src>

<mosaic_0001>
module attributes {stable_mosaic.version = 11 : i64} {
  func.func @_critic_kernel(%arg0: i32, %arg1: i32, %arg2: memref<8x8xf32, #tpu.memory_space<vmem>>, %arg3: memref<8x256xf32, #tpu.memory_space<vmem>>, %arg4: memref<1x256xf32, #tpu.memory_space<vmem>>, %arg5: memref<256x512xbf16, #tpu.memory_space<vmem>>, %arg6: memref<1x512xf32, #tpu.memory_space<vmem>>, %arg7: memref<1x512xf32, #tpu.memory_space<vmem>>, %arg8: memref<1xf32, #tpu.memory_space<smem>>, %arg9: memref<8x1xf32, #tpu.memory_space<vmem>>, %arg10: memref<8x512xf32, #tpu.memory_space<vmem>>) attributes {dimension_semantics = [#tpu.dimension_semantics<parallel>, #tpu.dimension_semantics<arbitrary>], iteration_bounds = array<i64: 1, 4>, scalar_prefetch = 0 : i64, scratch_operands = 1 : i64, tpu.core_type = #tpu.core_type<tc>, window_params = [{transform_indices = @transform_0, window_bounds = array<i64: 8, 8>}, {transform_indices = @transform_1, window_bounds = array<i64: 8, 256>}, {transform_indices = @transform_2, window_bounds = array<i64: 1, 256>}, {transform_indices = @transform_3, window_bounds = array<i64: 256, 512>}, {pipeline_mode = #tpu.pipeline_mode<synchronous>, transform_indices = @transform_4, window_bounds = array<i64: 1, 512>}, {pipeline_mode = #tpu.pipeline_mode<synchronous>, transform_indices = @transform_5, window_bounds = array<i64: 1, 512>}, {transform_indices = @transform_6, window_bounds = array<i64: 1>}, {transform_indices = @transform_7, window_bounds = array<i64: 8, 1>}]} {
    %c0_i32 = arith.constant 0 : i32
    %0 = arith.cmpi eq, %arg1, %c0_i32 : i32
    %1 = arith.extui %0 : i1 to i32
    %c0_i32_0 = arith.constant 0 : i32
    %2 = arith.cmpi ne, %1, %c0_i32_0 : i32
    scf.if %2 {
      %cst_15 = arith.constant 0.000000e+00 : f32
      %20 = vector.broadcast %cst_15 : f32 to vector<8x512xf32>
      %c0_16 = arith.constant 0 : index
      %c0_17 = arith.constant 0 : index
      %21 = vector.load %arg10[%c0_16, %c0_17] : memref<8x512xf32, #tpu.memory_space<vmem>>, vector<8x512xf32>
      tpu.vector_store %arg10[%c0_16, %c0_17], %20 {strides = array<i32>} : memref<8x512xf32, #tpu.memory_space<vmem>>, vector<8x512xf32>,
    } else {
    }
    %c0 = arith.constant 0 : index
    %c0_1 = arith.constant 0 : index
    %3 = vector.load %arg2[%c0, %c0_1] : memref<8x8xf32, #tpu.memory_space<vmem>>, vector<8x8xf32>
    %c0_2 = arith.constant 0 : index
    %c0_3 = arith.constant 0 : index
    %4 = vector.load %arg3[%c0_2, %c0_3] : memref<8x256xf32, #tpu.memory_space<vmem>>, vector<8x256xf32>
    %cst = arith.constant dense<0.000000e+00> : vector<8x256xf32>
    %5 = tpu.matmul %3, %4, %cst {dimension_numbers = #tpu.dot_dimension_numbers<[1], [0], [0], [1], [0, 0, 1, 1], [], []>} : vector<8x8xf32>, vector<8x256xf32>, vector<8x256xf32> -> vector<8x256xf32>
    %c0_4 = arith.constant 0 : index
    %c0_5 = arith.constant 0 : index
    %6 = vector.load %arg4[%c0_4, %c0_5] : memref<1x256xf32, #tpu.memory_space<vmem>>, vector<1x256xf32>
    %7 = vector.broadcast %6 : vector<1x256xf32> to vector<8x256xf32>
    %8 = arith.addf %5, %7 : vector<8x256xf32>
    %cst_6 = arith.constant 0.000000e+00 : f32
    %9 = vector.broadcast %cst_6 : f32 to vector<8x256xf32>
    %10 = arith.maximumf %8, %9 : vector<8x256xf32>
    %c0_7 = arith.constant 0 : index
    %c0_8 = arith.constant 0 : index
    %11 = vector.load %arg10[%c0_7, %c0_8] : memref<8x512xf32, #tpu.memory_space<vmem>>, vector<8x512xf32>
    %12 = arith.truncf %10 : vector<8x256xf32> to vector<8x256xbf16>
    %c0_9 = arith.constant 0 : index
    %c0_10 = arith.constant 0 : index
    %13 = vector.load %arg5[%c0_9, %c0_10] : memref<256x512xbf16, #tpu.memory_space<vmem>>, vector<256x512xbf16>
    %cst_11 = arith.constant dense<0.000000e+00> : vector<8x512xf32>
    %14 = tpu.matmul %12, %13, %cst_11 {dimension_numbers = #tpu.dot_dimension_numbers<[1], [0], [0], [1], [0, 0, 1, 1], [], []>} : vector<8x256xbf16>, vector<256x512xbf16>, vector<8x512xf32> -> vector<8x512xf32>
    %15 = arith.addf %11, %14 : vector<8x512xf32>
    %c0_12 = arith.constant 0 : index
    %c0_13 = arith.constant 0 : index
    %16 = vector.load %arg10[%c0_12, %c0_13] : memref<8x512xf32, #tpu.memory_space<vmem>>, vector<8x512xf32>
    tpu.vector_store %arg10[%c0_12, %c0_13], %15 {strides = array<i32>} : memref<8x512xf32, #tpu.memory_space<vmem>>, vector<8x512xf32>,
    %c3_i32 = arith.constant 3 : i32
    %17 = arith.cmpi eq, %arg1, %c3_i32 : i32
    %18 = arith.extui %17 : i1 to i32
    %c0_i32_14 = arith.constant 0 : i32
    %19 = arith.cmpi ne, %18, %c0_i32_14 : i32
    scf.if %19 {
      %c0_15 = arith.constant 0 : index
      %c0_16 = arith.constant 0 : index
      %20 = vector.load %arg10[%c0_15, %c0_16] : memref<8x512xf32, #tpu.memory_space<vmem>>, vector<8x512xf32>
      %c0_17 = arith.constant 0 : index
      %c0_18 = arith.constant 0 : index
      %21 = vector.load %arg6[%c0_17, %c0_18] : memref<1x512xf32, #tpu.memory_space<vmem>>, vector<1x512xf32>
      %22 = vector.broadcast %21 : vector<1x512xf32> to vector<8x512xf32>
      %23 = arith.addf %20, %22 : vector<8x512xf32>
      %cst_19 = arith.constant 0.000000e+00 : f32
      %24 = vector.broadcast %cst_19 : f32 to vector<8x512xf32>
      %25 = arith.maximumf %23, %24 : vector<8x512xf32>
      %c0_20 = arith.constant 0 : index
      %c0_21 = arith.constant 0 : index
      %26 = vector.load %arg7[%c0_20, %c0_21] : memref<1x512xf32, #tpu.memory_space<vmem>>, vector<1x512xf32>
      %27 = vector.broadcast %26 : vector<1x512xf32> to vector<8x512xf32>
      %28 = arith.mulf %25, %27 : vector<8x512xf32>
      %29 = vector.extract_strided_slice %28 {offsets = [0, 0], sizes = [8, 128], strides = [1, 1]} : vector<8x512xf32> to vector<8x128xf32>
      %30 = vector.extract_strided_slice %28 {offsets = [0, 128], sizes = [8, 128], strides = [1, 1]} : vector<8x512xf32> to vector<8x128xf32>
      %31 = arith.addf %29, %30 : vector<8x128xf32>
      %32 = vector.extract_strided_slice %28 {offsets = [0, 256], sizes = [8, 128], strides = [1, 1]} : vector<8x512xf32> to vector<8x128xf32>
      %33 = arith.addf %31, %32 : vector<8x128xf32>
      %34 = vector.extract_strided_slice %28 {offsets = [0, 384], sizes = [8, 128], strides = [1, 1]} : vector<8x512xf32> to vector<8x128xf32>
      %35 = arith.addf %33, %34 : vector<8x128xf32>
      %cst_22 = arith.constant dense<0.000000e+00> : vector<8xf32>
      %36 = vector.multi_reduction <add>, %35, %cst_22 [1] : vector<8x128xf32> to vector<8xf32>
      %37 = vector.shape_cast %36 : vector<8xf32> to vector<8x1xf32>
      %c0_23 = arith.constant 0 : index
      %38 = memref.load %arg8[%c0_23] : memref<1xf32, #tpu.memory_space<smem>>
      %39 = vector.broadcast %38 : f32 to vector<8x1xf32>
      %40 = arith.addf %37, %39 : vector<8x1xf32>
      %c0_24 = arith.constant 0 : index
      %c0_25 = arith.constant 0 : index
      %41 = vector.load %arg9[%c0_24, %c0_25] : memref<8x1xf32, #tpu.memory_space<vmem>>, vector<8x1xf32>
      tpu.vector_store %arg9[%c0_24, %c0_25], %40 {strides = array<i32>} : memref<8x1xf32, #tpu.memory_space<vmem>>, vector<8x1xf32>,
    } else {
    }
    return
  }
  func.func @transform_0(%arg0: i32, %arg1: i32) -> (i32, i32) {
    %c0_i32 = arith.constant 0 : i32
    %c0_i32_0 = arith.constant 0 : i32
    return %arg0, %c0_i32 : i32, i32
  }
  func.func @transform_1(%arg0: i32, %arg1: i32) -> (i32, i32) {
    %c0_i32 = arith.constant 0 : i32
    %c0_i32_0 = arith.constant 0 : i32
    return %c0_i32, %arg1 : i32, i32
  }
  func.func @transform_2(%arg0: i32, %arg1: i32) -> (i32, i32) {
    %c0_i32 = arith.constant 0 : i32
    %c0_i32_0 = arith.constant 0 : i32
    return %c0_i32, %arg1 : i32, i32
  }
  func.func @transform_3(%arg0: i32, %arg1: i32) -> (i32, i32) {
    %c0_i32 = arith.constant 0 : i32
    %c0_i32_0 = arith.constant 0 : i32
    return %arg1, %c0_i32 : i32, i32
  }
  func.func @transform_4(%arg0: i32, %arg1: i32) -> (i32, i32) {
    %c0_i32 = arith.constant 0 : i32
    %c0_i32_0 = arith.constant 0 : i32
    %c0_i32_1 = arith.constant 0 : i32
    return %c0_i32, %c0_i32_0 : i32, i32
  }
  func.func @transform_5(%arg0: i32, %arg1: i32) -> (i32, i32) {
    %c0_i32 = arith.constant 0 : i32
    %c0_i32_0 = arith.constant 0 : i32
    %c0_i32_1 = arith.constant 0 : i32
    return %c0_i32, %c0_i32_0 : i32, i32
  }
  func.func @transform_6(%arg0: i32, %arg1: i32) -> i32 {
    %c0_i32 = arith.constant 0 : i32
    %c0_i32_0 = arith.constant 0 : i32
    return %c0_i32 : i32
  }
  func.func @transform_7(%arg0: i32, %arg1: i32) -> (i32, i32) {
    %c0_i32 = arith.constant 0 : i32
    %c0_i32_0 = arith.constant 0 : i32
    return %arg0, %c0_i32 : i32, i32
  }
}

</mosaic_0001>

<llo_original>
// kernel: critic_forward.1
$region0: #{critic_forward.1}
  #allocation0 [shape = 'u32[]', space=smem, size = 0x4, offset = 0x4, fixed_abs, tag = 'smem constant byte address 0x4 - core index']
  #allocation1 [shape = 'u32[144,128]{1,0:T(1,128)}', space=vmem, size = 0x12000, scoped, tag = 'internal scratch']
  #allocation2 [shape = 'f32[8,512]{1,0:T(8,128)}', space=vmem, size = 0x4000, scoped, tag = 'scratch operand']
  #allocation3 [shape = 'f32[1]{0:T(128)S(6)}', space=smem, size = 0x200, scoped, tag = 'scoped memory for critic_forward.1']
  %s0 = inlined_call_operand.hbm [shape: f32[8,8], index: 0, kind: input, shape index: {}]
  %s1 = inlined_call_operand.hbm [shape: f32[8,1024], index: 1, kind: input, shape index: {}]
  %s2 = inlined_call_operand.vmem [shape: f32[1,1024], index: 2, kind: input, shape index: {}]
  %s3 = inlined_call_operand.hbm [shape: bf16[1024,512], index: 3, kind: input, shape index: {}]
  %s4 = inlined_call_operand.vmem [shape: f32[1,512], index: 4, kind: input, shape index: {}]
  %s5 = inlined_call_operand.vmem [shape: f32[1,512], index: 5, kind: input, shape index: {}]
  %s6 = inlined_call_operand.<no memory space> [shape: f32[1], index: 6, kind: input, shape index: {}]
  %s7 = inlined_call_operand.vmem [shape: f32[8,1], index: 7, kind: output, shape index: {}]
  %s8 = sld [smem:[#allocation0]]
  $region81: #{critic_forward.1} parent=0
    _
  %s10 = ssub.s32 1, %s8
  %s11 = scalar_select 0, %s10, %s8
  %12 = sst [smem:[#allocation3]] %s6
  $region1: #{critic_forward.1} parent=0
    #allocation4 [shape = 'u8[4096]{0}', space=vmem, size = 0x1000, scoped, tag = 'input window, operand 0, single buffered']
    #allocation5 [shape = 's32[2]{0}', space=sflag, size = 0x8, scoped, tag = 'scoped memory for critic_forward.1']
    #allocation6 [shape = 'u8[16384]{0}', space=vmem, size = 0x4000, scoped, tag = 'input window, operand 1']
    #allocation7 [shape = 's32[2]{0}', space=sflag, size = 0x8, scoped, tag = 'scoped memory for critic_forward.1']
    #allocation8 [shape = 'u8[524288]{0}', space=vmem, size = 0x80000, scoped, tag = 'input window, operand 3']
    %13 = vsyncpa [#allocation5], 0
    %14 = vsyncpa [#allocation7], 0
    %s15 = scalar_lea.sflag [#allocation7], 1
    %16 = vsyncpa %s15, 0
    loop: start=0, step=1, limit=6
    $region2: #{critic_forward.1} parent=1 // loop_pre_header
      _
    $region3: #{critic_forward.1} parent=1 // loop_header
      %s18 = sphi 0, %s22
      %p19 = scmp.ge.s32.totalorder %s18, 6
      %s25 = sphi 0, %s37
      %s26 = sphi 0, %s33
      %s27 = sphi 0, %s25
      %s28 = sphi 0, %s26
      %s29 = sphi 0, %s27
      %s30 = sphi 0, %s28
      %s40 = sphi 0, %s42
      %s43 = sphi 0, %s40
      %s44 = sphi 0, %s43
      %s60 = sphi 0, %s44
      %s66 = sphi 0, %s68
      %s69 = sphi 0, %s66
      %s70 = sphi 0, %s69
      %s86 = sphi 0, %s70
      %s92 = sphi 0, %s94
      %s95 = sphi 0, %s92
      %s96 = sphi 0, %s95
      %s112 = sphi 0, %s96
      %s118 = sphi 0, %s120
      %s121 = sphi 0, %s118
      %s122 = sphi 0, %s121
      %s138 = sphi 0, %s122
      %s142 = sphi 0, %s142
      %s144 = sphi 0, %s142
      %s145 = sphi 0, %s144
      %s159 = sphi 0, %s145
      %s163 = sphi 0, %s163
      %s165 = sphi 0, %s163
      %s166 = sphi 0, %s165
      %s180 = sphi 0, %s166
      %s184 = sphi 0, %s184
      %s186 = sphi 0, %s184
      %s187 = sphi 0, %s186
      %s201 = sphi 0, %s187
      %s207 = sphi 0, %s209
      %s210 = sphi 0, %s207
      %s211 = sphi 0, %s210
      %s227 = sphi 0, %s211
    $region4: #{critic_forward.1} parent=1 // loop_header_branch
      %21 = sbr.rel (%p19) target = $region8
    $region5: #{critic_forward.1} parent=1 // loop_body
      %s23 = ssub.s32 %s18, 1
      %s24 = ssub.s32 %s18, 2
      %s31 = sadd.s32 1, %s26
      %p32 = scmp.ge.s32.totalorder %s31, 4
      %s33 = scalar_select %p32, 0, %s31
      %s34 = sadd.s32 1, %s25
      %s35 = scalar_select %p32, %s34, %s25
      %p36 = scmp.ge.s32.totalorder %s35, 1
      %s37 = scalar_select %p36, 0, %s35
      %s38 = ssub.s32 %s25, %s37
      %p39 = scmp.eq.s32.totalorder %s38, 0
      %s41 = sadd.s32 %s40, 1
      %s42 = scalar_select %p39, %s40, %s41
      %p45 = pneg %p39
      %p46 = scmp.eq.s32.totalorder %s18, 3
      %p47 = por %p45, %p46
      %p48 = scmp.ne.s32.totalorder %s40, %s43
      %p49 = scmp.eq.s32.totalorder %s18, 0
      %p50 = por %p48, %p49
      %p51 = scmp.ne.s32.totalorder %s40, %s43
      %p52 = scmp.eq.s32.totalorder %s23, 3
      %p53 = por %p51, %p52
      %p54 = scmp.ne.s32.totalorder %s43, %s44
      %p55 = scmp.eq.s32.totalorder %s23, 0
      %p56 = por %p54, %p55
      %p57 = scmp.ne.s32.totalorder %s43, %s44
      %p58 = scmp.eq.s32.totalorder %s24, 3
      %p59 = por %p57, %p58
      %p61 = scmp.ne.s32.totalorder %s44, %s60
      %p62 = scmp.eq.s32.totalorder %s24, 0
      %p63 = por %p61, %p62
      %s64 = ssub.s32 %s26, %s33
      %p65 = scmp.eq.s32.totalorder %s64, 0
      %s67 = sadd.s32 %s66, 1
      %s68 = scalar_select %p65, %s66, %s67
      %p71 = pneg %p65
      %p72 = scmp.eq.s32.totalorder %s18, 3
      %p73 = por %p71, %p72
      %p74 = scmp.ne.s32.totalorder %s66, %s69
      %p75 = scmp.eq.s32.totalorder %s18, 0
      %p76 = por %p74, %p75
      %p77 = scmp.ne.s32.totalorder %s66, %s69
      %p78 = scmp.eq.s32.totalorder %s23, 3
      %p79 = por %p77, %p78
      %p80 = scmp.ne.s32.totalorder %s69, %s70
      %p81 = scmp.eq.s32.totalorder %s23, 0
      %p82 = por %p80, %p81
      %p83 = scmp.ne.s32.totalorder %s69, %s70
      %p84 = scmp.eq.s32.totalorder %s24, 3
      %p85 = por %p83, %p84
      %p87 = scmp.ne.s32.totalorder %s70, %s86
      %p88 = scmp.eq.s32.totalorder %s24, 0
      %p89 = por %p87, %p88
      %s90 = ssub.s32 %s26, %s33
      %p91 = scmp.eq.s32.totalorder %s90, 0
      %s93 = sadd.s32 %s92, 1
      %s94 = scalar_select %p91, %s92, %s93
      %p97 = pneg %p91
      %p98 = scmp.eq.s32.totalorder %s18, 3
      %p99 = por %p97, %p98
      %p100 = scmp.ne.s32.totalorder %s92, %s95
      %p101 = scmp.eq.s32.totalorder %s18, 0
      %p102 = por %p100, %p101
      %p103 = scmp.ne.s32.totalorder %s92, %s95
      %p104 = scmp.eq.s32.totalorder %s23, 3
      %p105 = por %p103, %p104
      %p106 = scmp.ne.s32.totalorder %s95, %s96
      %p107 = scmp.eq.s32.totalorder %s23, 0
      %p108 = por %p106, %p107
      %p109 = scmp.ne.s32.totalorder %s95, %s96
      %p110 = scmp.eq.s32.totalorder %s24, 3
      %p111 = por %p109, %p110
      %p113 = scmp.ne.s32.totalorder %s96, %s112
      %p114 = scmp.eq.s32.totalorder %s24, 0
      %p115 = por %p113, %p114
      %s116 = ssub.s32 %s26, %s33
      %p117 = scmp.eq.s32.totalorder %s116, 0
      %s119 = sadd.s32 %s118, 1
      %s120 = scalar_select %p117, %s118, %s119
      %p123 = pneg %p117
      %p124 = scmp.eq.s32.totalorder %s18, 3
      %p125 = por %p123, %p124
      %p126 = scmp.ne.s32.totalorder %s118, %s121
      %p127 = scmp.eq.s32.totalorder %s18, 0
      %p128 = por %p126, %p127
      %p129 = scmp.ne.s32.totalorder %s118, %s121
      %p130 = scmp.eq.s32.totalorder %s23, 3
      %p131 = por %p129, %p130
      %p132 = scmp.ne.s32.totalorder %s121, %s122
      %p133 = scmp.eq.s32.totalorder %s23, 0
      %p134 = por %p132, %p133
      %p135 = scmp.ne.s32.totalorder %s121, %s122
      %p136 = scmp.eq.s32.totalorder %s24, 3
      %p137 = por %p135, %p136
      %p139 = scmp.ne.s32.totalorder %s122, %s138
      %p140 = scmp.eq.s32.totalorder %s24, 0
      %p141 = por %p139, %p140
      %s143 = sadd.s32 %s142, 1
      %p146 = scmp.eq.s32.totalorder %s18, 3
      %p147 = scmp.ne.s32.totalorder %s142, %s144
      %p148 = scmp.eq.s32.totalorder %s18, 0
      %p149 = por %p147, %p148
      %p150 = scmp.ne.s32.totalorder %s142, %s144
      %p151 = scmp.eq.s32.totalorder %s23, 3
      %p152 = por %p150, %p151
      %p153 = scmp.ne.s32.totalorder %s144, %s145
      %p154 = scmp.eq.s32.totalorder %s23, 0
      %p155 = por %p153, %p154
      %p156 = scmp.ne.s32.totalorder %s144, %s145
      %p157 = scmp.eq.s32.totalorder %s24, 3
      %p158 = por %p156, %p157
      %p160 = scmp.ne.s32.totalorder %s145, %s159
      %p161 = scmp.eq.s32.totalorder %s24, 0
      %p162 = por %p160, %p161
      %s164 = sadd.s32 %s163, 1
      %p167 = scmp.eq.s32.totalorder %s18, 3
      %p168 = scmp.ne.s32.totalorder %s163, %s165
      %p169 = scmp.eq.s32.totalorder %s18, 0
      %p170 = por %p168, %p169
      %p171 = scmp.ne.s32.totalorder %s163, %s165
      %p172 = scmp.eq.s32.totalorder %s23, 3
      %p173 = por %p171, %p172
      %p174 = scmp.ne.s32.totalorder %s165, %s166
      %p175 = scmp.eq.s32.totalorder %s23, 0
      %p176 = por %p174, %p175
      %p177 = scmp.ne.s32.totalorder %s165, %s166
      %p178 = scmp.eq.s32.totalorder %s24, 3
      %p179 = por %p177, %p178
      %p181 = scmp.ne.s32.totalorder %s166, %s180
      %p182 = scmp.eq.s32.totalorder %s24, 0
      %p183 = por %p181, %p182
      %s185 = sadd.s32 %s184, 1
      %p188 = scmp.eq.s32.totalorder %s18, 3
      %p189 = scmp.ne.s32.totalorder %s184, %s186
      %p190 = scmp.eq.s32.totalorder %s18, 0
      %p191 = por %p189, %p190
      %p192 = scmp.ne.s32.totalorder %s184, %s186
      %p193 = scmp.eq.s32.totalorder %s23, 3
      %p194 = por %p192, %p193
      %p195 = scmp.ne.s32.totalorder %s186, %s187
      %p196 = scmp.eq.s32.totalorder %s23, 0
      %p197 = por %p195, %p196
      %p198 = scmp.ne.s32.totalorder %s186, %s187
      %p199 = scmp.eq.s32.totalorder %s24, 3
      %p200 = por %p198, %p199
      %p202 = scmp.ne.s32.totalorder %s187, %s201
      %p203 = scmp.eq.s32.totalorder %s24, 0
      %p204 = por %p202, %p203
      %s205 = ssub.s32 %s25, %s37
      %p206 = scmp.eq.s32.totalorder %s205, 0
      %s208 = sadd.s32 %s207, 1
      %s209 = scalar_select %p206, %s207, %s208
      %p212 = pneg %p206
      %p213 = scmp.eq.s32.totalorder %s18, 3
      %p214 = por %p212, %p213
      %p215 = scmp.ne.s32.totalorder %s207, %s210
      %p216 = scmp.eq.s32.totalorder %s18, 0
      %p217 = por %p215, %p216
      %p218 = scmp.ne.s32.totalorder %s207, %s210
      %p219 = scmp.eq.s32.totalorder %s23, 3
      %p220 = por %p218, %p219
      %p221 = scmp.ne.s32.totalorder %s210, %s211
      %p222 = scmp.eq.s32.totalorder %s23, 0
      %p223 = por %p221, %p222
      %p224 = scmp.ne.s32.totalorder %s210, %s211
      %p225 = scmp.eq.s32.totalorder %s24, 3
      %p226 = por %p224, %p225
      %p228 = scmp.ne.s32.totalorder %s211, %s227
      %p229 = scmp.eq.s32.totalorder %s24, 0
      %p230 = por %p228, %p229
      %p231 = scmp.le.s32.totalorder 1, %s18
      %p232 = scmp.lt.s32.totalorder %s18, 5
      %p233 = pnand %p231, %p232
      %p234 = pneg %p233
      // Predicated region
      $region9: #{critic_forward.1} parent=5 // pred_check
        _
      $region10: #{critic_forward.1} parent=5 // pred_check_branch
        %236 = sbr.rel (%p233) target = $region12
      $region11: #{critic_forward.1} parent=5 // pred_region
        %s237 = ssub.s32 %s18, 1
        // Predicated region
        $region13: #{critic_forward.1} parent=11 // pred_check
          %p238 = pneg %p56
        $region14: #{critic_forward.1} parent=11 // pred_check_branch
          %240 = sbr.rel (%p238) target = $region16
        $region15: #{critic_forward.1} parent=11 // pred_region
          %s242 = ssub.s32 128, 128
          %243 = vsyncadd [#allocation5], %s242
          %s244 = smul.addr %s27, 128
          %s245 = scalar_lea.hbm %s0, %s244
          %s247 = sshll.u32 [#allocation4], 4
          %s248 = int_to_ptr.vmem [resolvable:$true] %s247
          %250 = dma.hbm_to_vmem [thread:$0]  %s245, 128, %s248, [#allocation5]
        $region16: #{critic_forward.1} parent=11 // pred_fallthru
          _
        // Predicated region
        $region17: #{critic_forward.1} parent=11 // pred_check
          %p251 = pneg %p155
        $region18: #{critic_forward.1} parent=11 // pred_check_branch
          %253 = sbr.rel (%p251) target = $region20
        $region19: #{critic_forward.1} parent=11 // pred_region
          _
        $region20: #{critic_forward.1} parent=11 // pred_fallthru
          _
        // Predicated region
        $region21: #{critic_forward.1} parent=11 // pred_check
          %p254 = pneg %p176
        $region22: #{critic_forward.1} parent=11 // pred_check_branch
          %256 = sbr.rel (%p254) target = $region24
        $region23: #{critic_forward.1} parent=11 // pred_region
          _
        $region24: #{critic_forward.1} parent=11 // pred_fallthru
          _
        // Predicated region
        $region25: #{critic_forward.1} parent=11 // pred_check
          %p257 = pneg %p197
        $region26: #{critic_forward.1} parent=11 // pred_check_branch
          %259 = sbr.rel (%p257) target = $region28
        $region27: #{critic_forward.1} parent=11 // pred_region
          _
        $region28: #{critic_forward.1} parent=11 // pred_fallthru
          _
      $region12: #{critic_forward.1} parent=5 // pred_fallthru
        _
      %p260 = scmp.lt.s32.totalorder %s18, 4
      // Predicated region
      $region29: #{critic_forward.1} parent=5 // pred_check
        %p261 = pneg %p260
      $region30: #{critic_forward.1} parent=5 // pred_check_branch
        %263 = sbr.rel (%p261) target = $region32
      $region31: #{critic_forward.1} parent=5 // pred_region
        // Predicated region
        $region33: #{critic_forward.1} parent=31 // pred_check
          %p264 = pneg %p76
        $region34: #{critic_forward.1} parent=31 // pred_check_branch
          %266 = sbr.rel (%p264) target = $region36
        $region35: #{critic_forward.1} parent=31 // pred_region
          %s267 = sand.u32 %s18, 1
          %s268 = scalar_lea.sflag [#allocation7], %s267
          %s269 = sand.u32 %s66, 1
          %s270 = smul.addr %s269, 16
          %s271 = scalar_lea.vmem [#allocation6], %s270
          %s272 = smul.u32 2, %s26
          %s274 = ssub.s32 256, 256
          %275 = vsyncadd %s268, %s274
          %s276 = smul.addr %s272, 128
          %s277 = scalar_lea.hbm %s1, %s276
          %s279 = sshll.u32 %s271, 4
          %s280 = int_to_ptr.vmem [resolvable:$true] %s279
          %282 = dma.hbm_to_vmem [thread:$0]  %s277, 256, %s280, %s268
        $region36: #{critic_forward.1} parent=31 // pred_fallthru
          _
        // Predicated region
        $region37: #{critic_forward.1} parent=31 // pred_check
          %p283 = pneg %p102
        $region38: #{critic_forward.1} parent=31 // pred_check_branch
          %285 = sbr.rel (%p283) target = $region40
        $region39: #{critic_forward.1} parent=31 // pred_region
          %s286 = smul.u32 2, %s26
          %p287 = scmp.lt.s32.totalorder %s286, 7
          %s288 = scalar_select %p287, %s286, 7
          %s289 = scalar_lea.vmem %s2, %s288
          %s290 = smul.u32 2, %s26
        $region40: #{critic_forward.1} parent=31 // pred_fallthru
          _
        // Predicated region
        $region41: #{critic_forward.1} parent=31 // pred_check
          %p291 = pneg %p128
        $region42: #{critic_forward.1} parent=31 // pred_check_branch
          %293 = sbr.rel (%p291) target = $region44
        $region43: #{critic_forward.1} parent=31 // pred_region
          %s294 = sand.u32 %s18, 1
          %s295 = scalar_lea.sflag [#allocation7], %s294
          %s296 = sand.u32 %s118, 1
          %s297 = smul.addr %s296, 512
          %s298 = scalar_lea.vmem [#allocation8], %s297
          %s299 = smul.u32 32, %s26
          %s301 = ssub.s32 8192, 8192
          %302 = vsyncadd %s295, %s301
          %s303 = smul.addr %s299, 4
          %s304 = smul.addr %s303, 64
          %s305 = scalar_lea.hbm %s3, %s304
          %s306 = sshll.u32 %s298, 4
          %s307 = int_to_ptr.vmem [resolvable:$true] %s306
          %312 = dma.hbm_to_vmem [thread:$0]  %s305, 8192, %s307, %s295, 256, 256, 16
        $region44: #{critic_forward.1} parent=31 // pred_fallthru
          _
      $region32: #{critic_forward.1} parent=5 // pred_fallthru
        _
      %p313 = scmp.le.s32.totalorder 1, %s18
      %p314 = scmp.lt.s32.totalorder %s18, 5
      %p315 = pnand %p313, %p314
      %p316 = pneg %p315
      // Predicated region
      $region45: #{critic_forward.1} parent=5 // pred_check
        _
      $region46: #{critic_forward.1} parent=5 // pred_check_branch
        %318 = sbr.rel (%p315) target = $region48
      $region47: #{critic_forward.1} parent=5 // pred_region
        %s319 = ssub.s32 %s18, 1
        // Predicated region
        $region49: #{critic_forward.1} parent=47 // pred_check
          %p320 = pneg %p56
        $region50: #{critic_forward.1} parent=47 // pred_check_branch
          %322 = sbr.rel (%p320) target = $region52
        $region51: #{critic_forward.1} parent=47 // pred_region
          %323 = dma.done [#allocation5], 128
        $region52: #{critic_forward.1} parent=47 // pred_fallthru
          _
        %s324 = sand.u32 %s23, 1
        %s325 = scalar_lea.sflag [#allocation7], %s324
        %s326 = sand.u32 %s69, 1
        %s327 = smul.addr %s326, 16
        %s328 = scalar_lea.vmem [#allocation6], %s327
        // Predicated region
        $region53: #{critic_forward.1} parent=47 // pred_check
          %p329 = pneg %p82
        $region54: #{critic_forward.1} parent=47 // pred_check_branch
          %331 = sbr.rel (%p329) target = $region56
        $region55: #{critic_forward.1} parent=47 // pred_region
          %332 = dma.done %s325, 256
        $region56: #{critic_forward.1} parent=47 // pred_fallthru
          _
        %s333 = sand.u32 %s23, 1
        %s334 = scalar_lea.sflag [#allocation7], %s333
        %s335 = sand.u32 %s121, 1
        %s336 = smul.addr %s335, 512
        %s337 = scalar_lea.vmem [#allocation8], %s336
        // Predicated region
        $region57: #{critic_forward.1} parent=47 // pred_check
          %p338 = pneg %p134
        $region58: #{critic_forward.1} parent=47 // pred_check_branch
          %340 = sbr.rel (%p338) target = $region60
        $region59: #{critic_forward.1} parent=47 // pred_region
          %341 = dma.done %s334, 8192
        $region60: #{critic_forward.1} parent=47 // pred_fallthru
          _
        %p342 = pneg %p56
        %p343 = pneg %p53
        %s344 = sand.u32 %s23, 1
        %s345 = scalar_lea.sflag [#allocation7], %s344
        %s346 = sand.u32 %s69, 1
        %s347 = smul.addr %s346, 16
        %s348 = scalar_lea.vmem [#allocation6], %s347
        %p349 = pneg %p82
        %p350 = pneg %p79
        %s351 = smul.u32 2, %s28
        %p352 = scmp.lt.s32.totalorder %s351, 7
        %s353 = scalar_select %p352, %s351, 7
        %s354 = scalar_lea.vmem %s2, %s353
        %p355 = pneg %p108
        %p356 = pneg %p105
        %s357 = sand.u32 %s23, 1
        %s358 = scalar_lea.sflag [#allocation7], %s357
        %s359 = sand.u32 %s121, 1
        %s360 = smul.addr %s359, 512
        %s361 = scalar_lea.vmem [#allocation8], %s360
        %p362 = pneg %p134
        %p363 = pneg %p131
        %p364 = pneg %p155
        %p365 = pneg %p152
        %p366 = pneg %p176
        %p367 = pneg %p173
        %p368 = pneg %p197
        %p369 = pneg %p194
        %p370 = pneg %p223
        %p371 = pneg %p220
        %p372 = scmp.lt.s32.totalorder %s27, 0
        %s373 = scalar_select %p372, %s27, 0
        %s374 = smul.addr %s373, 8
        %s375 = scalar_lea.vmem %s7, %s374
        %s376 = smul.u32 2, %s28
        %s377 = smul.u32 2, %s28
        %p378 = scmp.lt.s32.totalorder %s377, 7
        %s379 = scalar_select %p378, %s377, 7
        %s380 = scalar_lea.vmem %s2, %s379
        %s381 = smul.u32 2, %s28
        %s382 = smul.u32 32, %s28
        %p383 = scmp.lt.s32.totalorder %s27, 0
        %s384 = scalar_select %p383, %s27, 0
        %s385 = smul.addr %s384, 8
        %s386 = scalar_lea.vmem %s7, %s385
        %p387 = scmp.eq.s32.totalorder %s28, 0
        // Predicated region
        $region61: #{critic_forward.1} parent=47 // pred_check
          %p388 = pneg %p387
        $region62: #{critic_forward.1} parent=47 // pred_check_branch
          %390 = sbr.rel (%p388) target = $region64
        $region63: #{critic_forward.1} parent=47 // pred_region
          %391 = vst [vmem:[#allocation2] sm:$0xff] 0.0
          %392 = vst [vmem:[#allocation2 + $0x8] sm:$0xff] 0.0
          %393 = vst [vmem:[#allocation2 + $0x10] sm:$0xff] 0.0
          %394 = vst [vmem:[#allocation2 + $0x18] sm:$0xff] 0.0
        $region64: #{critic_forward.1} parent=47 // pred_fallthru
          _
        %v395 = vld [vmem:[#allocation4] sm:$0xff]
        %v396 = vld [vmem:[%s328] sm:$0xff]
        %v397 = vld [vmem:[%s328 + $0x8] sm:$0xff]
        %v398 = vld [vmem:[%s380] sm:$0x3]
        %v400 = vlaneseq
        %v401 = vshrl.u32 %v400, 7
        %v402 = vsub.s32 0, %v401
        %v403 = vrot.slane %v398, %v402
        %v404 = vlaneseq
        %v405 = vshrl.u32 %v404, 7
        %v406 = vsub.s32 1, %v405
        %v407 = vrot.slane %v398, %v406
        %vm410 = vcmask 64512
        %v412 = vsel %vm410, %v395, 0
        %414 = vmatprep.subr.mxu0 %v397
        %415 = vmatpush1.msra.mxu0 %v396
        %416 = vmatprep.subr.mxu0 0.0
        %417 = vmatpush1.msra.mxu0 0.0
        %418 = vmatprep.subr.mxu0 0.0
        %419 = vmatpush1.msra.mxu0 0.0
        %420 = vmatprep.subr.mxu0 0.0
        %421 = vmatpush1.msra.mxu0 0.0
        %422 = vmatprep.subr.mxu0 0.0
        %423 = vmatpush1.msra.mxu0 0.0
        %424 = vmatprep.subr.mxu0 0.0
        %425 = vmatpush1.msra.mxu0 0.0
        %426 = vmatprep.subr.mxu0 0.0
        %427 = vmatpush1.msra.mxu0 0.0
        %428 = vmatprep.subr.mxu0 0.0
        %429 = vmatpush1.msra.mxu0 0.0
        %430 = vmatprep.subr.mxu0 0.0
        %431 = vmatpush1.msra.mxu0 0.0
        %432 = vmatprep.subr.mxu0 0.0
        %433 = vmatpush1.msra.mxu0 0.0
        %434 = vmatprep.subr.mxu0 0.0
        %435 = vmatpush1.msra.mxu0 0.0
        %436 = vmatprep.subr.mxu0 0.0
        %437 = vmatpush1.msra.mxu0 0.0
        %438 = vmatprep.subr.mxu0 0.0
        %439 = vmatpush1.msra.mxu0 0.0
        %440 = vmatprep.subr.mxu0 0.0
        %441 = vmatpush1.msra.mxu0 0.0
        %442 = vmatprep.subr.mxu0 0.0
        %443 = vmatpush1.msra.mxu0 0.0
        %444 = vmatprep.subr.mxu0 0.0
        %445 = vmatpush1.msra.mxu0 0.0
        %446 = vmatprep.subr.mxu0 0.0
        %447 = vmatpush1.msra.mxu0 0.0
        %448 = vmatprep.subr.mxu0 0.0
        %449 = vmatpush1.msra.mxu0 0.0
        %450 = vmatprep.subr.mxu0 0.0
        %451 = vmatpush1.msra.mxu0 0.0
        %452 = vmatprep.subr.mxu0 0.0
        %453 = vmatpush1.msra.mxu0 0.0
        %454 = vmatprep.subr.mxu0 0.0
        %455 = vmatpush1.msra.mxu0 0.0
        %456 = vmatprep.subr.mxu0 0.0
        %457 = vmatpush1.msra.mxu0 0.0
        %458 = vmatprep.subr.mxu0 0.0
        %459 = vmatpush1.msra.mxu0 0.0
        %460 = vmatprep.subr.mxu0 0.0
        %461 = vmatpush1.msra.mxu0 0.0
        %462 = vmatprep.subr.mxu0 0.0
        %463 = vmatpush1.msra.mxu0 0.0
        %464 = vmatprep.subr.mxu0 0.0
        %465 = vmatpush1.msra.mxu0 0.0
        %466 = vmatprep.subr.mxu0 0.0
        %467 = vmatpush1.msra.mxu0 0.0
        %468 = vmatprep.subr.mxu0 0.0
        %469 = vmatpush1.msra.mxu0 0.0
        %470 = vmatprep.subr.mxu0 0.0
        %471 = vmatpush1.msra.mxu0 0.0
        %472 = vmatprep.subr.mxu0 0.0
        %473 = vmatpush1.msra.mxu0 0.0
        %474 = vmatprep.subr.mxu0 0.0
        %475 = vmatpush1.msra.mxu0 0.0
        %476 = vmatprep.subr.mxu0 0.0
        %477 = vmatpush1.msra.mxu0 0.0
        %478 = vmatprep.mubr.f32.mxu0 0.0
        %479 = vmatmul.mubr.f32.gmra.mrb[0].mxu0 %v412
        %v480 = vpop.f32.mrb[0].mxu0
        %v481 = vadd.f32 %v403, %v480
        %v482 = vpop.f32.mrb[0].mxu0
        %v483 = vadd.f32 %v407, %v482
        %484 = vdwg.mxu0
        %v485 = vmax.f32 %v481, 0.0
        %v486 = vmax.f32 %v483, 0.0
        %v487 = vld [vmem:[#allocation2] sm:$0xff]
        %v488 = vld [vmem:[#allocation2 + $0x8] sm:$0xff]
        %v489 = vld [vmem:[#allocation2 + $0x10] sm:$0xff]
        %v490 = vld [vmem:[#allocation2 + $0x18] sm:$0xff]
        %v491 = vpack.c.bf16 %v485, %v485
        %v492 = vpack.c.bf16 %v486, %v486
        %v493 = vld [vmem:[%s337] sm:$0xff]
        %v494 = vld [vmem:[%s337 + $0x8] sm:$0xff]
        %v495 = vld [vmem:[%s337 + $0x10] sm:$0xff]
        %v496 = vld [vmem:[%s337 + $0x18] sm:$0xff]
        %v497 = vld [vmem:[%s337 + $0x20] sm:$0xff]
        %v498 = vld [vmem:[%s337 + $0x28] sm:$0xff]
        %v499 = vld [vmem:[%s337 + $0x30] sm:$0xff]
        %v500 = vld [vmem:[%s337 + $0x38] sm:$0xff]
        %v501 = vld [vmem:[%s337 + $0x40] sm:$0xff]
        %v502 = vld [vmem:[%s337 + $0x48] sm:$0xff]
        %v503 = vld [vmem:[%s337 + $0x50] sm:$0xff]
        %v504 = vld [vmem:[%s337 + $0x58] sm:$0xff]
        %v505 = vld [vmem:[%s337 + $0x60] sm:$0xff]
        %v506 = vld [vmem:[%s337 + $0x68] sm:$0xff]
        %v507 = vld [vmem:[%s337 + $0x70] sm:$0xff]
        %v508 = vld [vmem:[%s337 + $0x78] sm:$0xff]
        %v509 = vld [vmem:[%s337 + $0x80] sm:$0xff]
        %v510 = vld [vmem:[%s337 + $0x88] sm:$0xff]
        %v511 = vld [vmem:[%s337 + $0x90] sm:$0xff]
        %v512 = vld [vmem:[%s337 + $0x98] sm:$0xff]
        %v513 = vld [vmem:[%s337 + $0xa0] sm:$0xff]
        %v514 = vld [vmem:[%s337 + $0xa8] sm:$0xff]
        %v515 = vld [vmem:[%s337 + $0xb0] sm:$0xff]
        %v516 = vld [vmem:[%s337 + $0xb8] sm:$0xff]
        %v517 = vld [vmem:[%s337 + $0xc0] sm:$0xff]
        %v518 = vld [vmem:[%s337 + $0xc8] sm:$0xff]
        %v519 = vld [vmem:[%s337 + $0xd0] sm:$0xff]
        %v520 = vld [vmem:[%s337 + $0xd8] sm:$0xff]
        %v521 = vld [vmem:[%s337 + $0xe0] sm:$0xff]
        %v522 = vld [vmem:[%s337 + $0xe8] sm:$0xff]
        %v523 = vld [vmem:[%s337 + $0xf0] sm:$0xff]
        %v524 = vld [vmem:[%s337 + $0xf8] sm:$0xff]
        %v525 = vld [vmem:[%s337 + $0x100] sm:$0xff]
        %v526 = vld [vmem:[%s337 + $0x108] sm:$0xff]
        %v527 = vld [vmem:[%s337 + $0x110] sm:$0xff]
        %v528 = vld [vmem:[%s337 + $0x118] sm:$0xff]
        %v529 = vld [vmem:[%s337 + $0x120] sm:$0xff]
        %v530 = vld [vmem:[%s337 + $0x128] sm:$0xff]
        %v531 = vld [vmem:[%s337 + $0x130] sm:$0xff]
        %v532 = vld [vmem:[%s337 + $0x138] sm:$0xff]
        %v533 = vld [vmem:[%s337 + $0x140] sm:$0xff]
        %v534 = vld [vmem:[%s337 + $0x148] sm:$0xff]
        %v535 = vld [vmem:[%s337 + $0x150] sm:$0xff]
        %v536 = vld [vmem:[%s337 + $0x158] sm:$0xff]
        %v537 = vld [vmem:[%s337 + $0x160] sm:$0xff]
        %v538 = vld [vmem:[%s337 + $0x168] sm:$0xff]
        %v539 = vld [vmem:[%s337 + $0x170] sm:$0xff]
        %v540 = vld [vmem:[%s337 + $0x178] sm:$0xff]
        %v541 = vld [vmem:[%s337 + $0x180] sm:$0xff]
        %v542 = vld [vmem:[%s337 + $0x188] sm:$0xff]
        %v543 = vld [vmem:[%s337 + $0x190] sm:$0xff]
        %v544 = vld [vmem:[%s337 + $0x198] sm:$0xff]
        %v545 = vld [vmem:[%s337 + $0x1a0] sm:$0xff]
        %v546 = vld [vmem:[%s337 + $0x1a8] sm:$0xff]
        %v547 = vld [vmem:[%s337 + $0x1b0] sm:$0xff]
        %v548 = vld [vmem:[%s337 + $0x1b8] sm:$0xff]
        %v549 = vld [vmem:[%s337 + $0x1c0] sm:$0xff]
        %v550 = vld [vmem:[%s337 + $0x1c8] sm:$0xff]
        %v551 = vld [vmem:[%s337 + $0x1d0] sm:$0xff]
        %v552 = vld [vmem:[%s337 + $0x1d8] sm:$0xff]
        %v553 = vld [vmem:[%s337 + $0x1e0] sm:$0xff]
        %v554 = vld [vmem:[%s337 + $0x1e8] sm:$0xff]
        %v555 = vld [vmem:[%s337 + $0x1f0] sm:$0xff]
        %v556 = vld [vmem:[%s337 + $0x1f8] sm:$0xff]
        %v621 = vunpack.c.l.b16 %v493
        %v622 = vunpack.c.h.b16 %v493
        %v623 = vunpack.c.l.b16 %v494
        %v624 = vunpack.c.h.b16 %v494
        %v625 = vunpack.c.l.b16 %v495
        %v626 = vunpack.c.h.b16 %v495
        %v627 = vunpack.c.l.b16 %v496
        %v628 = vunpack.c.h.b16 %v496
        %v629 = vunpack.c.l.b16 %v497
        %v630 = vunpack.c.h.b16 %v497
        %v631 = vunpack.c.l.b16 %v498
        %v632 = vunpack.c.h.b16 %v498
        %v633 = vunpack.c.l.b16 %v499
        %v634 = vunpack.c.h.b16 %v499
        %v635 = vunpack.c.l.b16 %v500
        %v636 = vunpack.c.h.b16 %v500
        %v637 = vunpack.c.l.b16 %v501
        %v638 = vunpack.c.h.b16 %v501
        %v639 = vunpack.c.l.b16 %v502
        %v640 = vunpack.c.h.b16 %v502
        %v641 = vunpack.c.l.b16 %v503
        %v642 = vunpack.c.h.b16 %v503
        %v643 = vunpack.c.l.b16 %v504
        %v644 = vunpack.c.h.b16 %v504
        %v645 = vunpack.c.l.b16 %v505
        %v646 = vunpack.c.h.b16 %v505
        %v647 = vunpack.c.l.b16 %v506
        %v648 = vunpack.c.h.b16 %v506
        %v649 = vunpack.c.l.b16 %v507
        %v650 = vunpack.c.h.b16 %v507
        %v651 = vunpack.c.l.b16 %v508
        %v652 = vunpack.c.h.b16 %v508
        %v653 = vunpack.c.l.b16 %v509
        %v654 = vunpack.c.h.b16 %v509
        %v655 = vunpack.c.l.b16 %v510
        %v656 = vunpack.c.h.b16 %v510
        %v657 = vunpack.c.l.b16 %v511
        %v658 = vunpack.c.h.b16 %v511
        %v659 = vunpack.c.l.b16 %v512
        %v660 = vunpack.c.h.b16 %v512
        %v661 = vunpack.c.l.b16 %v513
        %v662 = vunpack.c.h.b16 %v513
        %v663 = vunpack.c.l.b16 %v514
        %v664 = vunpack.c.h.b16 %v514
        %v665 = vunpack.c.l.b16 %v515
        %v666 = vunpack.c.h.b16 %v515
        %v667 = vunpack.c.l.b16 %v516
        %v668 = vunpack.c.h.b16 %v516
        %v669 = vunpack.c.l.b16 %v517
        %v670 = vunpack.c.h.b16 %v517
        %v671 = vunpack.c.l.b16 %v518
        %v672 = vunpack.c.h.b16 %v518
        %v673 = vunpack.c.l.b16 %v519
        %v674 = vunpack.c.h.b16 %v519
        %v675 = vunpack.c.l.b16 %v520
        %v676 = vunpack.c.h.b16 %v520
        %v677 = vunpack.c.l.b16 %v521
        %v678 = vunpack.c.h.b16 %v521
        %v679 = vunpack.c.l.b16 %v522
        %v680 = vunpack.c.h.b16 %v522
        %v681 = vunpack.c.l.b16 %v523
        %v682 = vunpack.c.h.b16 %v523
        %v683 = vunpack.c.l.b16 %v524
        %v684 = vunpack.c.h.b16 %v524
        %v685 = vunpack.c.l.b16 %v525
        %v686 = vunpack.c.h.b16 %v525
        %v687 = vunpack.c.l.b16 %v526
        %v688 = vunpack.c.h.b16 %v526
        %v689 = vunpack.c.l.b16 %v527
        %v690 = vunpack.c.h.b16 %v527
        %v691 = vunpack.c.l.b16 %v528
        %v692 = vunpack.c.h.b16 %v528
        %v693 = vunpack.c.l.b16 %v529
        %v694 = vunpack.c.h.b16 %v529
        %v695 = vunpack.c.l.b16 %v530
        %v696 = vunpack.c.h.b16 %v530
        %v697 = vunpack.c.l.b16 %v531
        %v698 = vunpack.c.h.b16 %v531
        %v699 = vunpack.c.l.b16 %v532
        %v700 = vunpack.c.h.b16 %v532
        %v701 = vunpack.c.l.b16 %v533
        %v702 = vunpack.c.h.b16 %v533
        %v703 = vunpack.c.l.b16 %v534
        %v704 = vunpack.c.h.b16 %v534
        %v705 = vunpack.c.l.b16 %v535
        %v706 = vunpack.c.h.b16 %v535
        %v707 = vunpack.c.l.b16 %v536
        %v708 = vunpack.c.h.b16 %v536
        %v709 = vunpack.c.l.b16 %v537
        %v710 = vunpack.c.h.b16 %v537
        %v711 = vunpack.c.l.b16 %v538
        %v712 = vunpack.c.h.b16 %v538
        %v713 = vunpack.c.l.b16 %v539
        %v714 = vunpack.c.h.b16 %v539
        %v715 = vunpack.c.l.b16 %v540
        %v716 = vunpack.c.h.b16 %v540
        %v717 = vunpack.c.l.b16 %v541
        %v718 = vunpack.c.h.b16 %v541
        %v719 = vunpack.c.l.b16 %v542
        %v720 = vunpack.c.h.b16 %v542
        %v721 = vunpack.c.l.b16 %v543
        %v722 = vunpack.c.h.b16 %v543
        %v723 = vunpack.c.l.b16 %v544
        %v724 = vunpack.c.h.b16 %v544
        %v725 = vunpack.c.l.b16 %v545
        %v726 = vunpack.c.h.b16 %v545
        %v727 = vunpack.c.l.b16 %v546
        %v728 = vunpack.c.h.b16 %v546
        %v729 = vunpack.c.l.b16 %v547
        %v730 = vunpack.c.h.b16 %v547
        %v731 = vunpack.c.l.b16 %v548
        %v732 = vunpack.c.h.b16 %v548
        %v733 = vunpack.c.l.b16 %v549
        %v734 = vunpack.c.h.b16 %v549
        %v735 = vunpack.c.l.b16 %v550
        %v736 = vunpack.c.h.b16 %v550
        %v737 = vunpack.c.l.b16 %v551
        %v738 = vunpack.c.h.b16 %v551
        %v739 = vunpack.c.l.b16 %v552
        %v740 = vunpack.c.h.b16 %v552
        %v741 = vunpack.c.l.b16 %v553
        %v742 = vunpack.c.h.b16 %v553
        %v743 = vunpack.c.l.b16 %v554
        %v744 = vunpack.c.h.b16 %v554
        %v745 = vunpack.c.l.b16 %v555
        %v746 = vunpack.c.h.b16 %v555
        %v747 = vunpack.c.l.b16 %v556
        %v748 = vunpack.c.h.b16 %v556
        %v749 = vpack.c.b16 %v625, %v621
        %v750 = vpack.c.b16 %v626, %v622
        %v751 = vpack.c.b16 %v627, %v623
        %v752 = vpack.c.b16 %v628, %v624
        %v753 = vpack.c.b16 %v633, %v629
        %v754 = vpack.c.b16 %v634, %v630
        %v755 = vpack.c.b16 %v635, %v631
        %v756 = vpack.c.b16 %v636, %v632
        %v757 = vpack.c.b16 %v641, %v637
        %v758 = vpack.c.b16 %v642, %v638
        %v759 = vpack.c.b16 %v643, %v639
        %v760 = vpack.c.b16 %v644, %v640
        %v761 = vpack.c.b16 %v649, %v645
        %v762 = vpack.c.b16 %v650, %v646
        %v763 = vpack.c.b16 %v651, %v647
        %v764 = vpack.c.b16 %v652, %v648
        %v765 = vpack.c.b16 %v657, %v653
        %v766 = vpack.c.b16 %v658, %v654
        %v767 = vpack.c.b16 %v659, %v655
        %v768 = vpack.c.b16 %v660, %v656
        %v769 = vpack.c.b16 %v665, %v661
        %v770 = vpack.c.b16 %v666, %v662
        %v771 = vpack.c.b16 %v667, %v663
        %v772 = vpack.c.b16 %v668, %v664
        %v773 = vpack.c.b16 %v673, %v669
        %v774 = vpack.c.b16 %v674, %v670
        %v775 = vpack.c.b16 %v675, %v671
        %v776 = vpack.c.b16 %v676, %v672
        %v777 = vpack.c.b16 %v681, %v677
        %v778 = vpack.c.b16 %v682, %v678
        %v779 = vpack.c.b16 %v683, %v679
        %v780 = vpack.c.b16 %v684, %v680
        %v781 = vpack.c.b16 %v689, %v685
        %v782 = vpack.c.b16 %v690, %v686
        %v783 = vpack.c.b16 %v691, %v687
        %v784 = vpack.c.b16 %v692, %v688
        %v785 = vpack.c.b16 %v697, %v693
        %v786 = vpack.c.b16 %v698, %v694
        %v787 = vpack.c.b16 %v699, %v695
        %v788 = vpack.c.b16 %v700, %v696
        %v789 = vpack.c.b16 %v705, %v701
        %v790 = vpack.c.b16 %v706, %v702
        %v791 = vpack.c.b16 %v707, %v703
        %v792 = vpack.c.b16 %v708, %v704
        %v793 = vpack.c.b16 %v713, %v709
        %v794 = vpack.c.b16 %v714, %v710
        %v795 = vpack.c.b16 %v715, %v711
        %v796 = vpack.c.b16 %v716, %v712
        %v797 = vpack.c.b16 %v721, %v717
        %v798 = vpack.c.b16 %v722, %v718
        %v799 = vpack.c.b16 %v723, %v719
        %v800 = vpack.c.b16 %v724, %v720
        %v801 = vpack.c.b16 %v729, %v725
        %v802 = vpack.c.b16 %v730, %v726
        %v803 = vpack.c.b16 %v731, %v727
        %v804 = vpack.c.b16 %v732, %v728
        %v805 = vpack.c.b16 %v737, %v733
        %v806 = vpack.c.b16 %v738, %v734
        %v807 = vpack.c.b16 %v739, %v735
        %v808 = vpack.c.b16 %v740, %v736
        %v809 = vpack.c.b16 %v745, %v741
        %v810 = vpack.c.b16 %v746, %v742
        %v811 = vpack.c.b16 %v747, %v743
        %v812 = vpack.c.b16 %v748, %v744
        %877 = vmatprep.subr.bf16.mxu0 %v750
        %878 = vmatpush1.bf16.msra.mxu0 %v749
        %879 = vmatprep.subr.bf16.mxu0 %v754
        %880 = vmatpush1.bf16.msra.mxu0 %v753
        %881 = vmatprep.subr.bf16.mxu0 %v758
        %882 = vmatpush1.bf16.msra.mxu0 %v757
        %883 = vmatprep.subr.bf16.mxu0 %v762
        %884 = vmatpush1.bf16.msra.mxu0 %v761
        %885 = vmatprep.subr.bf16.mxu0 %v766
        %886 = vmatpush1.bf16.msra.mxu0 %v765
        %887 = vmatprep.subr.bf16.mxu0 %v770
        %888 = vmatpush1.bf16.msra.mxu0 %v769
        %889 = vmatprep.subr.bf16.mxu0 %v774
        %890 = vmatpush1.bf16.msra.mxu0 %v773
        %891 = vmatprep.subr.bf16.mxu0 %v778
        %892 = vmatpush1.bf16.msra.mxu0 %v777
        %893 = vmatprep.subr.bf16.mxu0 %v782
        %894 = vmatpush1.bf16.msra.mxu0 %v781
        %895 = vmatprep.subr.bf16.mxu0 %v786
        %896 = vmatpush1.bf16.msra.mxu0 %v785
        %897 = vmatprep.subr.bf16.mxu0 %v790
        %898 = vmatpush1.bf16.msra.mxu0 %v789
        %899 = vmatprep.subr.bf16.mxu0 %v794
        %900 = vmatpush1.bf16.msra.mxu0 %v793
        %901 = vmatprep.subr.bf16.mxu0 %v798
        %902 = vmatpush1.bf16.msra.mxu0 %v797
        %903 = vmatprep.subr.bf16.mxu0 %v802
        %904 = vmatpush1.bf16.msra.mxu0 %v801
        %905 = vmatprep.subr.bf16.mxu0 %v806
        %906 = vmatpush1.bf16.msra.mxu0 %v805
        %907 = vmatprep.subr.bf16.mxu0 %v810
        %908 = vmatpush1.bf16.msra.mxu0 %v809
        %909 = vmatprep.mubr.bf16.mxu0 %v492
        %910 = vmatmul.mubr.bf16.gmra.mrb[0].mxu0 %v491
        %v911 = vpop.f32.mrb[0].mxu0
        %v912 = vadd.f32 0.0, %v911
        %v913 = vpop.f32.mrb[0].mxu0
        %v914 = vadd.f32 0.0, %v913
        %v915 = vpop.f32.mrb[0].mxu0
        %v916 = vpop.f32.mrb[0].mxu0
        %917 = vdwg.mxu0
        %918 = vmatprep.subr.bf16.mxu0 %v752
        %919 = vmatpush1.bf16.msra.mxu0 %v751
        %920 = vmatprep.subr.bf16.mxu0 %v756
        %921 = vmatpush1.bf16.msra.mxu0 %v755
        %922 = vmatprep.subr.bf16.mxu0 %v760
        %923 = vmatpush1.bf16.msra.mxu0 %v759
        %924 = vmatprep.subr.bf16.mxu0 %v764
        %925 = vmatpush1.bf16.msra.mxu0 %v763
        %926 = vmatprep.subr.bf16.mxu0 %v768
        %927 = vmatpush1.bf16.msra.mxu0 %v767
        %928 = vmatprep.subr.bf16.mxu0 %v772
        %929 = vmatpush1.bf16.msra.mxu0 %v771
        %930 = vmatprep.subr.bf16.mxu0 %v776
        %931 = vmatpush1.bf16.msra.mxu0 %v775
        %932 = vmatprep.subr.bf16.mxu0 %v780
        %933 = vmatpush1.bf16.msra.mxu0 %v779
        %934 = vmatprep.subr.bf16.mxu0 %v784
        %935 = vmatpush1.bf16.msra.mxu0 %v783
        %936 = vmatprep.subr.bf16.mxu0 %v788
        %937 = vmatpush1.bf16.msra.mxu0 %v787
        %938 = vmatprep.subr.bf16.mxu0 %v792
        %939 = vmatpush1.bf16.msra.mxu0 %v791
        %940 = vmatprep.subr.bf16.mxu0 %v796
        %941 = vmatpush1.bf16.msra.mxu0 %v795
        %942 = vmatprep.subr.bf16.mxu0 %v800
        %943 = vmatpush1.bf16.msra.mxu0 %v799
        %944 = vmatprep.subr.bf16.mxu0 %v804
        %945 = vmatpush1.bf16.msra.mxu0 %v803
        %946 = vmatprep.subr.bf16.mxu0 %v808
        %947 = vmatpush1.bf16.msra.mxu0 %v807
        %948 = vmatprep.subr.bf16.mxu0 %v812
        %949 = vmatpush1.bf16.msra.mxu0 %v811
        %950 = vmatprep.mubr.bf16.mxu0 %v492
        %951 = vmatmul.mubr.bf16.gmra.mrb[0].mxu0 %v491
        %v952 = vpop.f32.mrb[0].mxu0
        %v953 = vadd.f32 0.0, %v952
        %v954 = vpop.f32.mrb[0].mxu0
        %v955 = vadd.f32 0.0, %v954
        %v956 = vpop.f32.mrb[0].mxu0
        %v957 = vpop.f32.mrb[0].mxu0
        %958 = vdwg.mxu0
        %v959 = vadd.f32 %v487, %v912
        %v960 = vadd.f32 %v488, %v914
        %v961 = vadd.f32 %v489, %v953
        %v962 = vadd.f32 %v490, %v955
        %963 = vst [vmem:[#allocation2] sm:$0xff] %v959
        %964 = vst [vmem:[#allocation2 + $0x8] sm:$0xff] %v960
        %965 = vst [vmem:[#allocation2 + $0x10] sm:$0xff] %v961
        %966 = vst [vmem:[#allocation2 + $0x18] sm:$0xff] %v962
        %p967 = scmp.eq.s32.totalorder %s28, 3
        // Predicated region
        $region65: #{critic_forward.1} parent=47 // pred_check
          %p968 = pneg %p967
        $region66: #{critic_forward.1} parent=47 // pred_check_branch
          %970 = sbr.rel (%p968) target = $region68
        $region67: #{critic_forward.1} parent=47 // pred_region
          %v971 = vld [vmem:[#allocation2] sm:$0xff]
          %v972 = vld [vmem:[#allocation2 + $0x8] sm:$0xff]
          %v973 = vld [vmem:[#allocation2 + $0x10] sm:$0xff]
          %v974 = vld [vmem:[#allocation2 + $0x18] sm:$0xff]
          %v975 = vld [vmem:[%s4] sm:$0xf]
          %v977 = vlaneseq
          %v978 = vshrl.u32 %v977, 7
          %v979 = vsub.s32 0, %v978
          %v980 = vrot.slane %v975, %v979
          %v981 = vlaneseq
          %v982 = vshrl.u32 %v981, 7
          %v983 = vsub.s32 1, %v982
          %v984 = vrot.slane %v975, %v983
          %v985 = vlaneseq
          %v986 = vshrl.u32 %v985, 7
          %v987 = vsub.s32 2, %v986
          %v988 = vrot.slane %v975, %v987
          %v989 = vlaneseq
          %v990 = vshrl.u32 %v989, 7
          %v991 = vsub.s32 3, %v990
          %v992 = vrot.slane %v975, %v991
          %v997 = vadd.f32 %v971, %v980
          %v998 = vadd.f32 %v972, %v984
          %v999 = vadd.f32 %v973, %v988
          %v1000 = vadd.f32 %v974, %v992
          %v1001 = vmax.f32 %v997, 0.0
          %v1002 = vmax.f32 %v998, 0.0
          %v1003 = vmax.f32 %v999, 0.0
          %v1004 = vmax.f32 %v1000, 0.0
          %v1005 = vld [vmem:[%s5] sm:$0xf]
          %v1007 = vlaneseq
          %v1008 = vshrl.u32 %v1007, 7
          %v1009 = vsub.s32 0, %v1008
          %v1010 = vrot.slane %v1005, %v1009
          %v1011 = vlaneseq
          %v1012 = vshrl.u32 %v1011, 7
          %v1013 = vsub.s32 1, %v1012
          %v1014 = vrot.slane %v1005, %v1013
          %v1015 = vlaneseq
          %v1016 = vshrl.u32 %v1015, 7
          %v1017 = vsub.s32 2, %v1016
          %v1018 = vrot.slane %v1005, %v1017
          %v1019 = vlaneseq
          %v1020 = vshrl.u32 %v1019, 7
          %v1021 = vsub.s32 3, %v1020
          %v1022 = vrot.slane %v1005, %v1021
          %v1027 = vmul.f32 %v1001, %v1010
          %v1028 = vmul.f32 %v1002, %v1014
          %v1029 = vmul.f32 %v1003, %v1018
          %v1030 = vmul.f32 %v1004, %v1022
          %v1031 = vadd.f32 %v1027, %v1028
          %v1032 = vadd.f32 %v1031, %v1029
          %v1033 = vadd.f32 %v1032, %v1030
          %1034 = vadd.xlane.f32.xlu0 %v1033
          %v1035 = vpop.xlane.xlu0 %1034
          %s1036 = sld [smem:[#allocation3]]
          %v1037 = vstv %s1036
          %v1038 = vadd.f32 %v1035, %v1037
          %vm1039 = vcmask 7168
          %1040 = vst.msk [vmem:[%s386] sm:$0xff] %vm1039, %v1038
        $region68: #{critic_forward.1} parent=47 // pred_fallthru
          _
        %p1041 = scmp.lt.s32.totalorder %s27, 0
        %s1042 = scalar_select %p1041, %s27, 0
        %s1043 = smul.addr %s1042, 8
        %s1044 = scalar_lea.vmem %s7, %s1043
        // Predicated region
        $region69: #{critic_forward.1} parent=47 // pred_check
          %p1045 = pneg %p220
        $region70: #{critic_forward.1} parent=47 // pred_check_branch
          %1047 = sbr.rel (%p1045) target = $region72
        $region71: #{critic_forward.1} parent=47 // pred_region
          _
        $region72: #{critic_forward.1} parent=47 // pred_fallthru
          _
        // Predicated region
        $region73: #{critic_forward.1} parent=47 // pred_check
          %p1048 = pneg %p220
        $region74: #{critic_forward.1} parent=47 // pred_check_branch
          %1050 = sbr.rel (%p1048) target = $region76
        $region75: #{critic_forward.1} parent=47 // pred_region
          %p1051 = scmp.lt.s32.totalorder %s27, 0
          %s1052 = scalar_select %p1051, %s27, 0
          %s1053 = smul.addr %s1052, 8
          %s1054 = scalar_lea.vmem %s7, %s1053
        $region76: #{critic_forward.1} parent=47 // pred_fallthru
          _
      $region48: #{critic_forward.1} parent=5 // pred_fallthru
        _
      %p1055 = scmp.le.s32.totalorder 2, %s18
      // Predicated region
      $region77: #{critic_forward.1} parent=5 // pred_check
        %p1056 = pneg %p1055
      $region78: #{critic_forward.1} parent=5 // pred_check_branch
        %1058 = sbr.rel (%p1056) target = $region80
      $region79: #{critic_forward.1} parent=5 // pred_region
        %s1059 = ssub.s32 %s18, 2
      $region80: #{critic_forward.1} parent=5 // pred_fallthru
        _
    $region6: #{critic_forward.1} parent=1 // loop_footer
      %s22 = sadd.s32 1, %s18
    $region7: #{critic_forward.1} parent=1 // loop_footer_branch
      %17 = sbr.rel target = $region3
    $region8: #{critic_forward.1} parent=1 // loop_exit
      _
    %1060 = vsyncpa [#allocation5], 1
    %s1061 = scalar_lea.sflag [#allocation5], 1
    %1062 = vsyncpa %s1061, 1
    %1063 = vsyncpa [#allocation7], 1
    %s1064 = scalar_lea.sflag [#allocation7], 1
    %1065 = vsyncpa %s1064, 1

</llo_original>
